<compile_context>
chip_gen: v5e
topology: v5e:2x2
jax: 0.10.0
libtpu: 0.0.40
codegen_flags: <defaults>
</compile_context>

<pallas_src>
import jax
import jax.numpy as jnp
from jax.experimental import pallas as pl
from jax.experimental.pallas import tpu as pltpu


def _round_up(n, m):
    return ((n + m - 1) // m) * m


def _linear_sigmoid_kernel(x_ref, wb_ref, b_ref, o_ref):
    # x_ref : (r, 128) VMEM -- 4 samples packed per 128-lane row (full lane utilization)
    # wb_ref: (128, 4) VMEM -- block-diagonal weight, resident across all grid steps
    # b_ref : (1, 1)   SMEM -- bias scalar
    # o_ref : (r, 4)   VMEM -- one sigmoid per packed sample
    x = x_ref[...].astype(jnp.float32)   # bf16 inputs upcast after load (v5e has no bf16 VPU)
    # Multiply + segmented per-sample reduce in a single pass on the otherwise-idle MXU;
    # the vector side only sees bias add, sigmoid and the (narrow) store.
    z = jnp.dot(x, wb_ref[...], preferred_element_type=jnp.float32) + b_ref[0, 0]
    # exp and reciprocal both ride the EUP slot (approx vrcp, ~2^-12 relative error).
    y = pl.reciprocal(1.0 + jnp.exp(-z), approx=True)
    o_ref[...] = y.astype(o_ref.dtype)


def linear_sigmoid(x, w, b, *, tm_max=32768):
    """y = sigmoid(x @ w.T + b) with w of shape (1, F), b of shape (1,). Returns (B, 1) f32.

    x may be float32 or bfloat16; bf16 halves HBM traffic on the x-stream-bound chips
    (v5e/v6e) while the kernel still computes in f32.
    """
    B, F = x.shape
    assert w.shape == (1, F) and b.shape == (1,)
    assert 128 % F == 0, "feature packing assumes F divides 128"
    g = 128 // F                       # samples packed per 128-lane row (4 for F=32)

    # Minimal padding only (<= g-1 rows) so the (B, F) -> (B/g, 128) reshape is a free
    # row-major view; no full-array jnp.pad copy up to a tile multiple anymore.
    B_pad = _round_up(B, g)
    if B_pad != B:
        x = jnp.pad(x, ((0, B_pad - B), (0, 0)))
    R = B_pad // g                     # packed rows, 128 lanes each
    xp = x.reshape(R, g * F)           # g consecutive samples per row (contiguous -> free)

    # Block-diagonal weight (g*F, g): column j carries w over lanes [j*F, (j+1)*F), so one
    # (r,128)@(128,g) matmul yields the g per-sample dot products of that packed row.
    wb = (jnp.eye(g, dtype=jnp.float32)[:, None, :]
          * w.reshape(1, F, 1).astype(jnp.float32)).reshape(g * F, g)

    # Packed-row tile size: big enough to amortize ~0.35 us/grid-step, small enough to
    # double-buffer in VMEM everywhere (tm_max=32768 samples -> 4 MiB per x buffer), and
    # >= 2 tiles when the batch allows so both v7x TensorCores get work.
    r_cap = max(8, tm_max // g)
    if R <= 16:
        r = R                          # tiny batch: single full-array block
    else:
        r = min(r_cap, _round_up(pl.cdiv(R, 2), 8))
    grid = pl.cdiv(R, r)               # ragged last block handled by Pallas, sliced off below

    out = pl.pallas_call(
        _linear_sigmoid_kernel,
        out_shape=jax.ShapeDtypeStruct((R, g), jnp.float32),
        grid_spec=pl.GridSpec(
            grid=(grid,),
            in_specs=[
                pl.BlockSpec((r, g * F), lambda i: (i, 0)),          # packed x tile
                pl.BlockSpec((g * F, g), lambda i: (0, 0)),          # resident weight
                pl.BlockSpec(memory_space=pltpu.MemorySpace.SMEM),   # bias scalar in SMEM
            ],
            out_specs=pl.BlockSpec((r, g), lambda i: (i, 0)),        # narrow per-tile result
        ),
        compiler_params=pltpu.CompilerParams(
            dimension_semantics=("parallel",),    # batch tiles shard across TCs on v7x
            vmem_limit_bytes=32 * 1024 * 1024),
    )(xp, wb, b.reshape(1, 1).astype(jnp.float32))

    # (R, g) row-major is exactly sample order; drop padding, return PyTorch-shaped (B, 1).
    return out.reshape(B_pad)[:B].reshape(B, 1)


if __name__ == "__main__":
    n_input_features = 32

    key = jax.random.PRNGKey(0)
    kx, kw, kb, kx2 = jax.random.split(key, 4)

    # Deterministic parameter init mimicking nn.Linear default (uniform in +-1/sqrt(F)).
    bound = 1.0 / jnp.sqrt(jnp.float32(n_input_features))
    w = jax.random.uniform(kw, (1, n_input_features), jnp.float32, -bound, bound)
    b = jax.random.uniform(kb, (1,), jnp.float32, -bound, bound)

    # Small single-tile case plus a larger multi-tile case with a ragged last block.
    for batch, kk in ((16, kx), (1000, kx2)):
        x = jax.random.normal(kk, (batch, n_input_features), jnp.float32)
        y = jax.block_until_ready(linear_sigmoid(x, w, b))

        # Cross-check against plain-JAX reference of the PyTorch forward.
        y_ref = jax.nn.sigmoid(x @ w.T + b)
        assert y.shape == (batch, 1)
        # Tolerance covers the approx-reciprocal EUP path (~2^-12 relative).
        assert jnp.allclose(y, y_ref, atol=2e-3, rtol=2e-3), float(jnp.max(jnp.abs(y - y_ref)))

    print("KERNEL_OK")
</pallas_src>

<mosaic_0001>
module attributes {stable_mosaic.version = 11 : i64} {
  func.func @_linear_sigmoid_kernel(%arg0: i32, %arg1: memref<4x128xf32, #tpu.memory_space<vmem>>, %arg2: memref<128x4xf32, #tpu.memory_space<vmem>>, %arg3: memref<1x1xf32, #tpu.memory_space<smem>>, %arg4: memref<4x4xf32, #tpu.memory_space<vmem>>) attributes {dimension_semantics = [#tpu.dimension_semantics<parallel>], iteration_bounds = array<i64: 1>, scalar_prefetch = 0 : i64, scratch_operands = 0 : i64, tpu.core_type = #tpu.core_type<tc>, window_params = [{transform_indices = @transform_0, window_bounds = array<i64: 4, 128>}, {pipeline_mode = #tpu.pipeline_mode<synchronous>, transform_indices = @transform_1, window_bounds = array<i64: 128, 4>}, {transform_indices = @transform_2, window_bounds = array<i64: 1, 1>}, {transform_indices = @transform_3, window_bounds = array<i64: 4, 4>}]} {
    %c0 = arith.constant 0 : index
    %c0_0 = arith.constant 0 : index
    %0 = vector.load %arg1[%c0, %c0_0] : memref<4x128xf32, #tpu.memory_space<vmem>>, vector<4x128xf32>
    %c0_1 = arith.constant 0 : index
    %c0_2 = arith.constant 0 : index
    %1 = vector.load %arg2[%c0_1, %c0_2] : memref<128x4xf32, #tpu.memory_space<vmem>>, vector<128x4xf32>
    %cst = arith.constant dense<0.000000e+00> : vector<4x4xf32>
    %2 = tpu.matmul %0, %1, %cst {dimension_numbers = #tpu.dot_dimension_numbers<[1], [0], [0], [1], [0, 0, 1, 1], [], []>} : vector<4x128xf32>, vector<128x4xf32>, vector<4x4xf32> -> vector<4x4xf32>
    %c0_3 = arith.constant 0 : index
    %c0_4 = arith.constant 0 : index
    %3 = memref.load %arg3[%c0_3, %c0_4] : memref<1x1xf32, #tpu.memory_space<smem>>
    %4 = vector.broadcast %3 : f32 to vector<4x4xf32>
    %5 = arith.addf %2, %4 : vector<4x4xf32>
    %cst_5 = arith.constant 0.000000e+00 : f32
    %6 = vector.broadcast %cst_5 : f32 to vector<4x4xf32>
    %7 = arith.subf %6, %5 : vector<4x4xf32>
    %8 = math.exp %7 : vector<4x4xf32>
    %cst_6 = arith.constant 1.000000e+00 : f32
    %9 = vector.broadcast %cst_6 : f32 to vector<4x4xf32>
    %10 = arith.addf %9, %8 : vector<4x4xf32>
    %11 = tpu.reciprocal %10 {approx = true} : vector<4x4xf32> -> vector<4x4xf32>
    %c0_7 = arith.constant 0 : index
    %c0_8 = arith.constant 0 : index
    %12 = vector.load %arg4[%c0_7, %c0_8] : memref<4x4xf32, #tpu.memory_space<vmem>>, vector<4x4xf32>
    tpu.vector_store %arg4[%c0_7, %c0_8], %11 {strides = array<i32>} : memref<4x4xf32, #tpu.memory_space<vmem>>, vector<4x4xf32>,
    return
  }
  func.func @transform_0(%arg0: i32) -> (i32, i32) {
    %c0_i32 = arith.constant 0 : i32
    %c0_i32_0 = arith.constant 0 : i32
    return %arg0, %c0_i32 : i32, i32
  }
  func.func @transform_1(%arg0: i32) -> (i32, i32) {
    %c0_i32 = arith.constant 0 : i32
    %c0_i32_0 = arith.constant 0 : i32
    %c0_i32_1 = arith.constant 0 : i32
    return %c0_i32, %c0_i32_0 : i32, i32
  }
  func.func @transform_2(%arg0: i32) -> (i32, i32) {
    %c0_i32 = arith.constant 0 : i32
    %c0_i32_0 = arith.constant 0 : i32
    %c0_i32_1 = arith.constant 0 : i32
    return %c0_i32, %c0_i32_0 : i32, i32
  }
  func.func @transform_3(%arg0: i32) -> (i32, i32) {
    %c0_i32 = arith.constant 0 : i32
    %c0_i32_0 = arith.constant 0 : i32
    return %arg0, %c0_i32 : i32, i32
  }
}

</mosaic_0001>

<llo_original>
// kernel: tpu_custom_call.1
$region0: #{tpu_custom_call.1}
  #allocation0 [shape = 'u32[]', space=smem, size = 0x4, offset = 0x4, fixed_abs, tag = 'smem constant byte address 0x4 - core index']
  #allocation1 [shape = 'u32[72,128]{1,0:T(1,128)}', space=vmem, size = 0x9000, scoped, tag = 'internal scratch']
  #allocation2 [shape = 'f32[1,1]{1,0:T(1,128)S(6)}', space=smem, size = 0x200, scoped, tag = 'scoped memory for tpu_custom_call.1']
  %s0 = inlined_call_operand.vmem [shape: f32[4,128], index: 0, kind: input, shape index: {}]
  %s1 = inlined_call_operand.vmem [shape: f32[128,4], index: 1, kind: input, shape index: {}]
  %s2 = inlined_call_operand.<no memory space> [shape: f32[1,1], index: 2, kind: input, shape index: {}]
  %s3 = inlined_call_operand.hbm [shape: f32[4,4], index: 3, kind: output, shape index: {}]
  %s4 = sld [smem:[#allocation0]]
  $region22: #{tpu_custom_call.1} parent=0
    _
  %s6 = ssub.s32 1, %s4
  %s7 = scalar_select 0, %s6, %s4
  %8 = sst [smem:[#allocation2]] %s2
  $region1: #{tpu_custom_call.1} parent=0
    #allocation3 [shape = 'u8[2048]{0}', space=vmem, size = 0x800, scoped, tag = 'output window, operand 0, single buffered']
    #allocation4 [shape = 's32[1]{0}', space=sflag, size = 0x4, scoped, tag = 'scoped memory for tpu_custom_call.1']
    %9 = vsyncpa [#allocation4], 0
    // Predicated region
    $region2: #{tpu_custom_call.1} parent=1 // pred_check
      _
    $region3: #{tpu_custom_call.1} parent=1 // pred_check_branch
      %11 = sbr.rel (0) target = $region5
    $region4: #{tpu_custom_call.1} parent=1 // pred_region
      _
    $region5: #{tpu_custom_call.1} parent=1 // pred_fallthru
      _
    // Predicated region
    $region6: #{tpu_custom_call.1} parent=1 // pred_check
      _
    $region7: #{tpu_custom_call.1} parent=1 // pred_check_branch
      %13 = sbr.rel (0) target = $region9
    $region8: #{tpu_custom_call.1} parent=1 // pred_region
      _
    $region9: #{tpu_custom_call.1} parent=1 // pred_fallthru
      _
    // Predicated region
    $region10: #{tpu_custom_call.1} parent=1 // pred_check
      _
    $region11: #{tpu_custom_call.1} parent=1 // pred_check_branch
      %15 = sbr.rel (0) target = $region13
    $region12: #{tpu_custom_call.1} parent=1 // pred_region
      _
    $region13: #{tpu_custom_call.1} parent=1 // pred_fallthru
      _
    %v16 = vld [vmem:[%s0] sm:$0xf]
    %v17 = vld [vmem:[%s1] sm:$0xff]
    %v18 = vld [vmem:[%s1 + $0x8] sm:$0xff]
    %v19 = vld [vmem:[%s1 + $0x10] sm:$0xff]
    %v20 = vld [vmem:[%s1 + $0x18] sm:$0xff]
    %v21 = vld [vmem:[%s1 + $0x20] sm:$0xff]
    %v22 = vld [vmem:[%s1 + $0x28] sm:$0xff]
    %v23 = vld [vmem:[%s1 + $0x30] sm:$0xff]
    %v24 = vld [vmem:[%s1 + $0x38] sm:$0xff]
    %v25 = vld [vmem:[%s1 + $0x40] sm:$0xff]
    %v26 = vld [vmem:[%s1 + $0x48] sm:$0xff]
    %v27 = vld [vmem:[%s1 + $0x50] sm:$0xff]
    %v28 = vld [vmem:[%s1 + $0x58] sm:$0xff]
    %v29 = vld [vmem:[%s1 + $0x60] sm:$0xff]
    %v30 = vld [vmem:[%s1 + $0x68] sm:$0xff]
    %v31 = vld [vmem:[%s1 + $0x70] sm:$0xff]
    %v32 = vld [vmem:[%s1 + $0x78] sm:$0xff]
    %s33 = sld [smem:[#allocation2]]
    %v34 = vstv %s33
    %35 = vmatpush.msra.mxu0 %v32
    %36 = vmatpush.msra.mxu0 %v31
    %37 = vmatpush.msra.mxu0 %v30
    %38 = vmatpush.msra.mxu0 %v29
    %39 = vmatpush.msra.mxu0 %v28
    %40 = vmatpush.msra.mxu0 %v27
    %41 = vmatpush.msra.mxu0 %v26
    %42 = vmatpush.msra.mxu0 %v25
    %43 = vmatpush.msra.mxu0 %v24
    %44 = vmatpush.msra.mxu0 %v23
    %45 = vmatpush.msra.mxu0 %v22
    %46 = vmatpush.msra.mxu0 %v21
    %47 = vmatpush.msra.mxu0 %v20
    %48 = vmatpush.msra.mxu0 %v19
    %49 = vmatpush.msra.mxu0 %v18
    %50 = vmatpush.msra.mxu0 %v17
    %51 = vmatmul.f32.gmra.mxu0 %v16
    %v52 = vpop.f32.mrf.mxu0
    %v53 = vadd.f32 %v34, %v52
    %54 = vdwg.mxu0
    %v55 = vsub.f32 0.0, %v53
    %v56 = vmul.f32 %v55, 1.442695
    %v57 = vpow.pop %v56
    %v58 = vadd.f32 %v57, 1.0
    %v59 = vrcp.pop %v58
    %vm60 = vcmask 27648
    %61 = vst.msk [vmem:[#allocation3] sm:$0xf] %vm60, %v59
    // Predicated region
    $region14: #{tpu_custom_call.1} parent=1 // pred_check
      _
    $region15: #{tpu_custom_call.1} parent=1 // pred_check_branch
      %63 = sbr.rel (0) target = $region17
    $region16: #{tpu_custom_call.1} parent=1 // pred_region
      %65 = vsyncadd [#allocation4], 0
      %s67 = sshll.u32 [#allocation3], 4
      %s68 = int_to_ptr.vmem [resolvable:$true] %s67
      %s69 = sshll.u32 %s3, 4
      %s70 = int_to_ptr.hbm [resolvable:$true] %s69
      %72 = dma.vmem_to_hbm [thread:$0]  %s68, 64, %s70, [#allocation4]
    $region17: #{tpu_custom_call.1} parent=1 // pred_fallthru
      _
    // Predicated region
    $region18: #{tpu_custom_call.1} parent=1 // pred_check
      _
    $region19: #{tpu_custom_call.1} parent=1 // pred_check_branch
      %74 = sbr.rel (0) target = $region21
    $region20: #{tpu_custom_call.1} parent=1 // pred_region
      %76 = dma.done [#allocation4], 64
    $region21: #{tpu_custom_call.1} parent=1 // pred_fallthru
      _
    %77 = vsyncpa [#allocation4], 1

</llo_original>
